<compile_context>
chip_gen: v7x
topology: tpu7x:2x2x1
jax: 0.10.0
libtpu: 0.0.40
codegen_flags: <defaults>
</compile_context>

<pallas_src>
import math

import jax
import jax.numpy as jnp
from jax import lax
from jax.experimental import pallas as pl
from jax.experimental.pallas import tpu as pltpu

LEAKY_SLOPE = 0.01  # torch.nn.LeakyReLU default negative_slope
IN_FEATURES = 12
NT_DIMS = (((1,), (1,)), ((), ()))  # contract the feature dim of both operands


def _leaky_relu(x):
    # max(x, slope*x): 2 VPU ops instead of cmp+mul+select.
    return jnp.maximum(x, LEAKY_SLOPE * x)


def _round_up(x, m):
    return ((x + m - 1) // m) * m


def _make_kernel(chunk, num_chunks):
    """Kernel factory; chunk/num_chunks are Python constants baked at trace time."""

    def kernel(x_ref, w1_ref, b1_ref, w2_ref, b2_ref, w3_ref, b3_ref, o_ref):
        # Load resident weights/biases once per grid step (tiny).
        w1 = w1_ref[...]
        b1 = b1_ref[...]
        w2 = w2_ref[...]
        b2 = b2_ref[...]
        w3 = w3_ref[...]
        b3 = b3_ref[...]

        def compute(xs):
            # xs: (chunk, 12) in the streamed dtype (f32 or bf16); no upcast —
            # the MXU accumulates in f32 via preferred_element_type.
            h1 = lax.dot_general(w1, xs, NT_DIMS,
                                 preferred_element_type=jnp.float32)  # (64, chunk)
            h1 = _leaky_relu(h1 + b1)
            h2 = jnp.dot(w2, h1.astype(w2.dtype),
                         preferred_element_type=jnp.float32)          # (32, chunk)
            h2 = _leaky_relu(h2 + b2)
            out = jnp.dot(w3, h2.astype(w3.dtype),
                          preferred_element_type=jnp.float32)         # (1, chunk)
            return (out + b3).astype(o_ref.dtype)

        if num_chunks == 1:
            o_ref[...] = compute(x_ref[...])
        else:
            def body(c, carry):
                off = pl.multiple_of(c * chunk, chunk)
                o_ref[:, pl.ds(off, chunk)] = compute(x_ref[pl.ds(off, chunk), :])
                return carry

            lax.fori_loop(0, num_chunks, body, 0, unroll=(num_chunks <= 8))

    return kernel


def critic_forward(state, params, *, block_b=32768, chunk_b=4096,
                   activation_dtype=None):
    """state: [B, 12] -> [B, 1] float32 (matches torch.nn.Linear semantics).

    By default the activation stream keeps its incoming dtype (f32 -> exact
    torch semantics, no extra conversion pass over HBM).  Pass
    activation_dtype=jnp.bfloat16 only if you accept bf16-rounded inputs.
    """
    w1, b1, w2, b2, w3, b3 = params
    B, F = state.shape
    assert F == IN_FEATURES, state.shape
    assert chunk_b % 128 == 0, "chunk_b must be a multiple of 128"
    assert block_b % chunk_b == 0, "block_b must be a multiple of chunk_b"

    dt = state.dtype if activation_dtype is None else jnp.dtype(activation_dtype)
    x = state if state.dtype == dt else state.astype(dt)
    # Weights are tiny: cast once to the streamed dtype for single-pass MXU
    # matmuls.  Biases stay f32 (added after f32 accumulation).
    w1c = w1 if w1.dtype == dt else w1.astype(dt)
    w2c = w2 if w2.dtype == dt else w2.astype(dt)
    w3c = w3 if w3.dtype == dt else w3.astype(dt)

    # Tile selection:
    #  - cap at block_b (VMEM budget) and at ~half the batch rounded to chunk_b
    #    so large batches always give >=2 grid blocks (v7x dual-TC sharding);
    #  - small batches collapse to a single block/chunk of round_up(B, 8) rows.
    b_aligned = _round_up(B, 8)
    candidate = min(block_b, _round_up(pl.cdiv(B, 2), chunk_b))
    if b_aligned <= candidate:
        tb, chunk = b_aligned, b_aligned        # single block, single chunk
    else:
        tb, chunk = candidate, chunk_b          # tb is a multiple of chunk_b
    num_blocks = pl.cdiv(B, tb)
    num_chunks = tb // chunk
    b_out = num_blocks * tb                     # output tiles exactly; slice below

    def resident(arr):  # whole array, DMA'd once, VMEM-resident across steps
        return pl.BlockSpec(arr.shape, lambda i: (0, 0))

    out = pl.pallas_call(
        _make_kernel(chunk, num_chunks),
        out_shape=jax.ShapeDtypeStruct((1, b_out), jnp.float32),
        grid=(num_blocks,),
        in_specs=[
            pl.BlockSpec((tb, F), lambda i: (i, 0)),      # batch-tiled activations
            resident(w1c), resident(b1),
            resident(w2c), resident(b2),
            resident(w3c), resident(b3),
        ],
        out_specs=pl.BlockSpec((1, tb), lambda i: (0, i)),  # lane-dense output
        compiler_params=pltpu.CompilerParams(
            dimension_semantics=("parallel",),
            vmem_limit_bytes=48 * 1024 * 1024,
        ),
    )(x, w1c, b1, w2c, b2, w3c, b3)

    # Rows >= B of the ragged final block are garbage (clipped reads) and are
    # sliced off here; do not rely on them.
    return out[0, :B].reshape(B, 1)


def init_params(key):
    """PyTorch-style default init: U(-1/sqrt(fan_in), 1/sqrt(fan_in)).

    Weights stored [out_features, in_features] (PyTorch layout); biases as
    [out_features, 1] columns.
    """
    dims = [(12, 64), (64, 32), (32, 1)]
    params = []
    for fan_in, fan_out in dims:
        key, kw, kb = jax.random.split(key, 3)
        bound = 1.0 / math.sqrt(fan_in)
        w = jax.random.uniform(kw, (fan_out, fan_in), jnp.float32, -bound, bound)
        b = jax.random.uniform(kb, (fan_out, 1), jnp.float32, -bound, bound)
        params.extend([w, b])
    return tuple(params)


def critic_reference(state, params):
    """Pure-JAX reference (same math as torch: x @ W^T + b per layer)."""
    w1, b1, w2, b2, w3, b3 = params
    hi = lax.Precision.HIGHEST
    h1 = jax.nn.leaky_relu(jnp.dot(state, w1.T, precision=hi) + b1[:, 0], LEAKY_SLOPE)
    h2 = jax.nn.leaky_relu(jnp.dot(h1, w2.T, precision=hi) + b2[:, 0], LEAKY_SLOPE)
    return jnp.dot(h2, w3.T, precision=hi) + b3[:, 0]


if __name__ == "__main__":
    key = jax.random.PRNGKey(0)
    key, k1, k2 = jax.random.split(key, 3)
    params = init_params(key)

    # Small-batch check: single block, single chunk, f32 streamed as-is.
    B = 64
    state = jax.random.normal(k1, (B, IN_FEATURES), dtype=jnp.float32)
    out = jax.block_until_ready(critic_forward(state, params))
    ref = critic_reference(state, params)
    assert out.shape == (B, 1), out.shape
    assert jnp.allclose(out, ref, atol=1e-3, rtol=1e-3), (out, ref)

    # Multi-block + in-kernel chunk loop + ragged tail (3000 % 1024 != 0).
    B2 = 3000
    state2 = jax.random.normal(k2, (B2, IN_FEATURES), dtype=jnp.float32)
    out2 = jax.block_until_ready(
        critic_forward(state2, params, block_b=1024, chunk_b=256))
    ref2 = critic_reference(state2, params)
    assert out2.shape == (B2, 1), out2.shape
    assert jnp.allclose(out2, ref2, atol=1e-3, rtol=1e-3), (out2, ref2)

    print("KERNEL_OK")
</pallas_src>

<mosaic_0001>
module attributes {stable_mosaic.version = 11 : i64} {
  func.func @kernel(%arg0: i32, %arg1: memref<64x12xf32, #tpu.memory_space<vmem>>, %arg2: memref<64x12xf32, #tpu.memory_space<vmem>>, %arg3: memref<64x1xf32, #tpu.memory_space<vmem>>, %arg4: memref<32x64xf32, #tpu.memory_space<vmem>>, %arg5: memref<32x1xf32, #tpu.memory_space<vmem>>, %arg6: memref<1x32xf32, #tpu.memory_space<vmem>>, %arg7: memref<1x1xf32, #tpu.memory_space<vmem>>, %arg8: memref<1x64xf32, #tpu.memory_space<vmem>>) attributes {dimension_semantics = [#tpu.dimension_semantics<parallel>], iteration_bounds = array<i64: 1>, scalar_prefetch = 0 : i64, scratch_operands = 0 : i64, tpu.core_type = #tpu.core_type<tc>, window_params = [{transform_indices = @transform_0, window_bounds = array<i64: 64, 12>}, {pipeline_mode = #tpu.pipeline_mode<synchronous>, transform_indices = @transform_1, window_bounds = array<i64: 64, 12>}, {pipeline_mode = #tpu.pipeline_mode<synchronous>, transform_indices = @transform_2, window_bounds = array<i64: 64, 1>}, {pipeline_mode = #tpu.pipeline_mode<synchronous>, transform_indices = @transform_3, window_bounds = array<i64: 32, 64>}, {pipeline_mode = #tpu.pipeline_mode<synchronous>, transform_indices = @transform_4, window_bounds = array<i64: 32, 1>}, {pipeline_mode = #tpu.pipeline_mode<synchronous>, transform_indices = @transform_5, window_bounds = array<i64: 1, 32>}, {pipeline_mode = #tpu.pipeline_mode<synchronous>, transform_indices = @transform_6, window_bounds = array<i64: 1, 1>}, {transform_indices = @transform_7, window_bounds = array<i64: 1, 64>}]} {
    %c0 = arith.constant 0 : index
    %c0_0 = arith.constant 0 : index
    %0 = vector.load %arg2[%c0, %c0_0] : memref<64x12xf32, #tpu.memory_space<vmem>>, vector<64x12xf32>
    %c0_1 = arith.constant 0 : index
    %c0_2 = arith.constant 0 : index
    %1 = vector.load %arg3[%c0_1, %c0_2] : memref<64x1xf32, #tpu.memory_space<vmem>>, vector<64x1xf32>
    %c0_3 = arith.constant 0 : index
    %c0_4 = arith.constant 0 : index
    %2 = vector.load %arg4[%c0_3, %c0_4] : memref<32x64xf32, #tpu.memory_space<vmem>>, vector<32x64xf32>
    %c0_5 = arith.constant 0 : index
    %c0_6 = arith.constant 0 : index
    %3 = vector.load %arg5[%c0_5, %c0_6] : memref<32x1xf32, #tpu.memory_space<vmem>>, vector<32x1xf32>
    %c0_7 = arith.constant 0 : index
    %c0_8 = arith.constant 0 : index
    %4 = vector.load %arg6[%c0_7, %c0_8] : memref<1x32xf32, #tpu.memory_space<vmem>>, vector<1x32xf32>
    %c0_9 = arith.constant 0 : index
    %c0_10 = arith.constant 0 : index
    %5 = vector.load %arg7[%c0_9, %c0_10] : memref<1x1xf32, #tpu.memory_space<vmem>>, vector<1x1xf32>
    %c0_11 = arith.constant 0 : index
    %c0_12 = arith.constant 0 : index
    %6 = vector.load %arg1[%c0_11, %c0_12] : memref<64x12xf32, #tpu.memory_space<vmem>>, vector<64x12xf32>
    %cst = arith.constant dense<0.000000e+00> : vector<64x64xf32>
    %7 = tpu.matmul %0, %6, %cst {dimension_numbers = #tpu.dot_dimension_numbers<[1], [1], [0], [0], [0, 0, 1, 0], [], []>} : vector<64x12xf32>, vector<64x12xf32>, vector<64x64xf32> -> vector<64x64xf32>
    %8 = vector.broadcast %1 : vector<64x1xf32> to vector<64x64xf32>
    %9 = arith.addf %7, %8 : vector<64x64xf32>
    %cst_13 = arith.constant 0.00999999977 : f32
    %10 = vector.broadcast %cst_13 : f32 to vector<64x64xf32>
    %11 = arith.mulf %10, %9 : vector<64x64xf32>
    %12 = arith.maximumf %9, %11 : vector<64x64xf32>
    %cst_14 = arith.constant dense<0.000000e+00> : vector<32x64xf32>
    %13 = tpu.matmul %2, %12, %cst_14 {dimension_numbers = #tpu.dot_dimension_numbers<[1], [0], [0], [1], [0, 0, 1, 1], [], []>} : vector<32x64xf32>, vector<64x64xf32>, vector<32x64xf32> -> vector<32x64xf32>
    %14 = vector.broadcast %3 : vector<32x1xf32> to vector<32x64xf32>
    %15 = arith.addf %13, %14 : vector<32x64xf32>
    %cst_15 = arith.constant 0.00999999977 : f32
    %16 = vector.broadcast %cst_15 : f32 to vector<32x64xf32>
    %17 = arith.mulf %16, %15 : vector<32x64xf32>
    %18 = arith.maximumf %15, %17 : vector<32x64xf32>
    %cst_16 = arith.constant dense<0.000000e+00> : vector<1x64xf32>
    %19 = tpu.matmul %4, %18, %cst_16 {dimension_numbers = #tpu.dot_dimension_numbers<[1], [0], [0], [1], [0, 0, 1, 1], [], []>} : vector<1x32xf32>, vector<32x64xf32>, vector<1x64xf32> -> vector<1x64xf32>
    %20 = vector.broadcast %5 : vector<1x1xf32> to vector<1x64xf32>
    %21 = arith.addf %19, %20 : vector<1x64xf32>
    %c0_17 = arith.constant 0 : index
    %c0_18 = arith.constant 0 : index
    %22 = vector.load %arg8[%c0_17, %c0_18] : memref<1x64xf32, #tpu.memory_space<vmem>>, vector<1x64xf32>
    tpu.vector_store %arg8[%c0_17, %c0_18], %21 {strides = array<i32>} : memref<1x64xf32, #tpu.memory_space<vmem>>, vector<1x64xf32>,
    return
  }
  func.func @transform_0(%arg0: i32) -> (i32, i32) {
    %c0_i32 = arith.constant 0 : i32
    %c0_i32_0 = arith.constant 0 : i32
    return %arg0, %c0_i32 : i32, i32
  }
  func.func @transform_1(%arg0: i32) -> (i32, i32) {
    %c0_i32 = arith.constant 0 : i32
    %c0_i32_0 = arith.constant 0 : i32
    %c0_i32_1 = arith.constant 0 : i32
    return %c0_i32, %c0_i32_0 : i32, i32
  }
  func.func @transform_2(%arg0: i32) -> (i32, i32) {
    %c0_i32 = arith.constant 0 : i32
    %c0_i32_0 = arith.constant 0 : i32
    %c0_i32_1 = arith.constant 0 : i32
    return %c0_i32, %c0_i32_0 : i32, i32
  }
  func.func @transform_3(%arg0: i32) -> (i32, i32) {
    %c0_i32 = arith.constant 0 : i32
    %c0_i32_0 = arith.constant 0 : i32
    %c0_i32_1 = arith.constant 0 : i32
    return %c0_i32, %c0_i32_0 : i32, i32
  }
  func.func @transform_4(%arg0: i32) -> (i32, i32) {
    %c0_i32 = arith.constant 0 : i32
    %c0_i32_0 = arith.constant 0 : i32
    %c0_i32_1 = arith.constant 0 : i32
    return %c0_i32, %c0_i32_0 : i32, i32
  }
  func.func @transform_5(%arg0: i32) -> (i32, i32) {
    %c0_i32 = arith.constant 0 : i32
    %c0_i32_0 = arith.constant 0 : i32
    %c0_i32_1 = arith.constant 0 : i32
    return %c0_i32, %c0_i32_0 : i32, i32
  }
  func.func @transform_6(%arg0: i32) -> (i32, i32) {
    %c0_i32 = arith.constant 0 : i32
    %c0_i32_0 = arith.constant 0 : i32
    %c0_i32_1 = arith.constant 0 : i32
    return %c0_i32, %c0_i32_0 : i32, i32
  }
  func.func @transform_7(%arg0: i32) -> (i32, i32) {
    %c0_i32 = arith.constant 0 : i32
    %c0_i32_0 = arith.constant 0 : i32
    return %c0_i32, %arg0 : i32, i32
  }
}

</mosaic_0001>

<llo_original>
// kernel: tpu_custom_call.1
$region0: #{tpu_custom_call.1}
  #allocation0 [shape = 'u32[]', space=smem, size = 0x4, offset = 0x4, fixed_abs, tag = 'smem constant byte address 0x4 - core index']
  #allocation1 [shape = 'u32[144,128]{1,0:T(1,128)}', space=vmem, size = 0x12000, scoped, tag = 'internal scratch']
  #allocation2 [shape = 'f32[1,1]{1,0:T(1,128)S(1)}', space=vmem, size = 0x200, scoped, tag = 'scoped memory for tpu_custom_call.1']
  %s0 = inlined_call_operand.vmem [shape: f32[64,12], index: 0, kind: input, shape index: {}]
  %s1 = inlined_call_operand.vmem [shape: f32[64,12], index: 1, kind: input, shape index: {}]
  %s2 = inlined_call_operand.vmem [shape: f32[64,1], index: 2, kind: input, shape index: {}]
  %s3 = inlined_call_operand.vmem [shape: f32[32,64], index: 3, kind: input, shape index: {}]
  %s4 = inlined_call_operand.vmem [shape: f32[32,1], index: 4, kind: input, shape index: {}]
  %s5 = inlined_call_operand.vmem [shape: f32[1,32], index: 5, kind: input, shape index: {}]
  %s6 = inlined_call_operand.<no memory space> [shape: f32[1,1], index: 6, kind: input, shape index: {}]
  %s7 = inlined_call_operand.hbm [shape: f32[1,64], index: 7, kind: output, shape index: {}]
  %s8 = sld [smem:[#allocation0]]
  $region38: #{tpu_custom_call.1} parent=0
    _
  %s10 = ssub.s32 1, %s8
  %s11 = scalar_select 0, %s10, %s8
  %v12 = vstv %s6
  %13 = vst [vmem:[#allocation2] sm:$0x1] %v12
  $region1: #{tpu_custom_call.1} parent=0
    #allocation3 [shape = 'u8[512]{0}', space=vmem, size = 0x400, scoped, tag = 'output window, operand 0, single buffered']
    #allocation4 [shape = 's32[1]{0}', space=sflag, size = 0x4, scoped, tag = 'scoped memory for tpu_custom_call.1']
    %14 = vsyncpa [#allocation4], 0
    // Predicated region
    $region2: #{tpu_custom_call.1} parent=1 // pred_check
      _
    $region3: #{tpu_custom_call.1} parent=1 // pred_check_branch
      %16 = sbr.rel (0) target = $region5
    $region4: #{tpu_custom_call.1} parent=1 // pred_region
      _
    $region5: #{tpu_custom_call.1} parent=1 // pred_fallthru
      _
    // Predicated region
    $region6: #{tpu_custom_call.1} parent=1 // pred_check
      _
    $region7: #{tpu_custom_call.1} parent=1 // pred_check_branch
      %18 = sbr.rel (0) target = $region9
    $region8: #{tpu_custom_call.1} parent=1 // pred_region
      _
    $region9: #{tpu_custom_call.1} parent=1 // pred_fallthru
      _
    // Predicated region
    $region10: #{tpu_custom_call.1} parent=1 // pred_check
      _
    $region11: #{tpu_custom_call.1} parent=1 // pred_check_branch
      %20 = sbr.rel (0) target = $region13
    $region12: #{tpu_custom_call.1} parent=1 // pred_region
      _
    $region13: #{tpu_custom_call.1} parent=1 // pred_fallthru
      _
    // Predicated region
    $region14: #{tpu_custom_call.1} parent=1 // pred_check
      _
    $region15: #{tpu_custom_call.1} parent=1 // pred_check_branch
      %22 = sbr.rel (0) target = $region17
    $region16: #{tpu_custom_call.1} parent=1 // pred_region
      _
    $region17: #{tpu_custom_call.1} parent=1 // pred_fallthru
      _
    // Predicated region
    $region18: #{tpu_custom_call.1} parent=1 // pred_check
      _
    $region19: #{tpu_custom_call.1} parent=1 // pred_check_branch
      %24 = sbr.rel (0) target = $region21
    $region20: #{tpu_custom_call.1} parent=1 // pred_region
      _
    $region21: #{tpu_custom_call.1} parent=1 // pred_fallthru
      _
    // Predicated region
    $region22: #{tpu_custom_call.1} parent=1 // pred_check
      _
    $region23: #{tpu_custom_call.1} parent=1 // pred_check_branch
      %26 = sbr.rel (0) target = $region25
    $region24: #{tpu_custom_call.1} parent=1 // pred_region
      _
    $region25: #{tpu_custom_call.1} parent=1 // pred_fallthru
      _
    // Predicated region
    $region26: #{tpu_custom_call.1} parent=1 // pred_check
      _
    $region27: #{tpu_custom_call.1} parent=1 // pred_check_branch
      %28 = sbr.rel (0) target = $region29
    $region28: #{tpu_custom_call.1} parent=1 // pred_region
      _
    $region29: #{tpu_custom_call.1} parent=1 // pred_fallthru
      _
    %v29 = vld [vmem:[%s1] sm:$0xff]
    %v30 = vld [vmem:[%s1 + $0x8] sm:$0xff]
    %v31 = vld [vmem:[%s1 + $0x10] sm:$0xff]
    %v32 = vld [vmem:[%s1 + $0x18] sm:$0xff]
    %v33 = vld [vmem:[%s1 + $0x20] sm:$0xff]
    %v34 = vld [vmem:[%s1 + $0x28] sm:$0xff]
    %v35 = vld [vmem:[%s1 + $0x30] sm:$0xff]
    %v36 = vld [vmem:[%s1 + $0x38] sm:$0xff]
    %v37 = vld [vmem:[%s2] sm:$0xff]
    %v38 = vld [vmem:[%s2 + $0x8] sm:$0xff]
    %v39 = vld [vmem:[%s2 + $0x10] sm:$0xff]
    %v40 = vld [vmem:[%s2 + $0x18] sm:$0xff]
    %v41 = vld [vmem:[%s2 + $0x20] sm:$0xff]
    %v42 = vld [vmem:[%s2 + $0x28] sm:$0xff]
    %v43 = vld [vmem:[%s2 + $0x30] sm:$0xff]
    %v44 = vld [vmem:[%s2 + $0x38] sm:$0xff]
    %v45 = vld [vmem:[%s3] sm:$0xff]
    %v46 = vld [vmem:[%s3 + $0x8] sm:$0xff]
    %v47 = vld [vmem:[%s3 + $0x10] sm:$0xff]
    %v48 = vld [vmem:[%s3 + $0x18] sm:$0xff]
    %v49 = vld [vmem:[%s4] sm:$0xff]
    %v50 = vld [vmem:[%s4 + $0x8] sm:$0xff]
    %v51 = vld [vmem:[%s4 + $0x10] sm:$0xff]
    %v52 = vld [vmem:[%s4 + $0x18] sm:$0xff]
    %v53 = vld [vmem:[%s5] sm:$0x1]
    %v54 = vld [vmem:[#allocation2] sm:$0x1]
    %v55 = vld [vmem:[%s0] sm:$0xff]
    %v56 = vld [vmem:[%s0 + $0x8] sm:$0xff]
    %v57 = vld [vmem:[%s0 + $0x10] sm:$0xff]
    %v58 = vld [vmem:[%s0 + $0x18] sm:$0xff]
    %v59 = vld [vmem:[%s0 + $0x20] sm:$0xff]
    %v60 = vld [vmem:[%s0 + $0x28] sm:$0xff]
    %v61 = vld [vmem:[%s0 + $0x30] sm:$0xff]
    %v62 = vld [vmem:[%s0 + $0x38] sm:$0xff]
    %64 = vset.pattern.permute.xlu0 0
    %65 = vperm.xlu0 %64, %v37
    %v66 = vpop.permute.xlu0 %65
    %69 = vset.pattern.permute.xlu0 0
    %70 = vperm.xlu0 %69, %v38
    %v71 = vpop.permute.xlu0 %70
    %74 = vset.pattern.permute.xlu0 0
    %75 = vperm.xlu0 %74, %v39
    %v76 = vpop.permute.xlu0 %75
    %79 = vset.pattern.permute.xlu0 0
    %80 = vperm.xlu0 %79, %v40
    %v81 = vpop.permute.xlu0 %80
    %84 = vset.pattern.permute.xlu0 0
    %85 = vperm.xlu0 %84, %v41
    %v86 = vpop.permute.xlu0 %85
    %89 = vset.pattern.permute.xlu0 0
    %90 = vperm.xlu0 %89, %v42
    %v91 = vpop.permute.xlu0 %90
    %94 = vset.pattern.permute.xlu0 0
    %95 = vperm.xlu0 %94, %v43
    %v96 = vpop.permute.xlu0 %95
    %99 = vset.pattern.permute.xlu0 0
    %100 = vperm.xlu0 %99, %v44
    %v101 = vpop.permute.xlu0 %100
    %vm103 = vcmask 97280
    %v105 = vsel %vm103, %v29, 0
    %v108 = vsel %vm103, %v30, 0
    %v111 = vsel %vm103, %v31, 0
    %v114 = vsel %vm103, %v32, 0
    %v117 = vsel %vm103, %v33, 0
    %v120 = vsel %vm103, %v34, 0
    %v123 = vsel %vm103, %v35, 0
    %v126 = vsel %vm103, %v36, 0
    %v129 = vsel %vm103, %v55, 0
    %v132 = vsel %vm103, %v56, 0
    %v135 = vsel %vm103, %v57, 0
    %v138 = vsel %vm103, %v58, 0
    %v141 = vsel %vm103, %v59, 0
    %v144 = vsel %vm103, %v60, 0
    %v147 = vsel %vm103, %v61, 0
    %v150 = vsel %vm103, %v62, 0
    %152 = vmatprep.subr.mxu0 0.0
    %153 = vmatpush1.xpose.msra.mxu0 %v129
    %154 = vmatprep.subr.mxu0 0.0
    %155 = vmatpush1.xpose.msra.mxu0 %v132
    %156 = vmatprep.subr.mxu0 0.0
    %157 = vmatpush1.xpose.msra.mxu0 %v135
    %158 = vmatprep.subr.mxu0 0.0
    %159 = vmatpush1.xpose.msra.mxu0 %v138
    %160 = vmatprep.subr.mxu0 0.0
    %161 = vmatpush1.xpose.msra.mxu0 %v141
    %162 = vmatprep.subr.mxu0 0.0
    %163 = vmatpush1.xpose.msra.mxu0 %v144
    %164 = vmatprep.subr.mxu0 0.0
    %165 = vmatpush1.xpose.msra.mxu0 %v147
    %166 = vmatprep.subr.mxu0 0.0
    %167 = vmatpush1.xpose.msra.mxu0 %v150
    %168 = vmatprep.subr.mxu0 0.0
    %169 = vmatpush1.xpose.msra.mxu0 0.0
    %170 = vmatprep.subr.mxu0 0.0
    %171 = vmatpush1.xpose.msra.mxu0 0.0
    %172 = vmatprep.subr.mxu0 0.0
    %173 = vmatpush1.xpose.msra.mxu0 0.0
    %174 = vmatprep.subr.mxu0 0.0
    %175 = vmatpush1.xpose.msra.mxu0 0.0
    %176 = vmatprep.subr.mxu0 0.0
    %177 = vmatpush1.xpose.msra.mxu0 0.0
    %178 = vmatprep.subr.mxu0 0.0
    %179 = vmatpush1.xpose.msra.mxu0 0.0
    %180 = vmatprep.subr.mxu0 0.0
    %181 = vmatpush1.xpose.msra.mxu0 0.0
    %182 = vmatprep.subr.mxu0 0.0
    %183 = vmatpush1.xpose.msra.mxu0 0.0
    %184 = vmatprep.subr.mxu0 0.0
    %185 = vmatpush1.xpose.msra.mxu0 0.0
    %186 = vmatprep.subr.mxu0 0.0
    %187 = vmatpush1.xpose.msra.mxu0 0.0
    %188 = vmatprep.subr.mxu0 0.0
    %189 = vmatpush1.xpose.msra.mxu0 0.0
    %190 = vmatprep.subr.mxu0 0.0
    %191 = vmatpush1.xpose.msra.mxu0 0.0
    %192 = vmatprep.subr.mxu0 0.0
    %193 = vmatpush1.xpose.msra.mxu0 0.0
    %194 = vmatprep.subr.mxu0 0.0
    %195 = vmatpush1.xpose.msra.mxu0 0.0
    %196 = vmatprep.subr.mxu0 0.0
    %197 = vmatpush1.xpose.msra.mxu0 0.0
    %198 = vmatprep.subr.mxu0 0.0
    %199 = vmatpush1.xpose.msra.mxu0 0.0
    %200 = vmatprep.subr.mxu0 0.0
    %201 = vmatpush1.xpose.msra.mxu0 0.0
    %202 = vmatprep.subr.mxu0 0.0
    %203 = vmatpush1.xpose.msra.mxu0 0.0
    %204 = vmatprep.subr.mxu0 0.0
    %205 = vmatpush1.xpose.msra.mxu0 0.0
    %206 = vmatprep.subr.mxu0 0.0
    %207 = vmatpush1.xpose.msra.mxu0 0.0
    %208 = vmatprep.subr.mxu0 0.0
    %209 = vmatpush1.xpose.msra.mxu0 0.0
    %210 = vmatprep.subr.mxu0 0.0
    %211 = vmatpush1.xpose.msra.mxu0 0.0
    %212 = vmatprep.subr.mxu0 0.0
    %213 = vmatpush1.xpose.msra.mxu0 0.0
    %214 = vmatprep.subr.mxu0 0.0
    %215 = vmatpush1.xpose.msra.mxu0 0.0
    %216 = vmatprep.mubr.f32.mxu0 0.0
    %217 = vmatmul.mubr.f32.gmra.mrb[0].mxu0 %v105
    %v218 = vpop.f32.mrb[0].mxu0
    %v219 = vadd.f32 %v66, %v218
    %v220 = vpop.f32.mrb[0].mxu0
    %221 = vmatprep.mubr.f32.mxu0 0.0
    %222 = vmatmul.mubr.f32.gmra.mrb[0].mxu0 %v108
    %v223 = vpop.f32.mrb[0].mxu0
    %v224 = vadd.f32 %v71, %v223
    %v225 = vpop.f32.mrb[0].mxu0
    %226 = vmatprep.mubr.f32.mxu0 0.0
    %227 = vmatmul.mubr.f32.gmra.mrb[0].mxu0 %v111
    %v228 = vpop.f32.mrb[0].mxu0
    %v229 = vadd.f32 %v76, %v228
    %v230 = vpop.f32.mrb[0].mxu0
    %231 = vmatprep.mubr.f32.mxu0 0.0
    %232 = vmatmul.mubr.f32.gmra.mrb[0].mxu0 %v114
    %v233 = vpop.f32.mrb[0].mxu0
    %v234 = vadd.f32 %v81, %v233
    %v235 = vpop.f32.mrb[0].mxu0
    %236 = vmatprep.mubr.f32.mxu0 0.0
    %237 = vmatmul.mubr.f32.gmra.mrb[0].mxu0 %v117
    %v238 = vpop.f32.mrb[0].mxu0
    %v239 = vadd.f32 %v86, %v238
    %v240 = vpop.f32.mrb[0].mxu0
    %241 = vmatprep.mubr.f32.mxu0 0.0
    %242 = vmatmul.mubr.f32.gmra.mrb[0].mxu0 %v120
    %v243 = vpop.f32.mrb[0].mxu0
    %v244 = vadd.f32 %v91, %v243
    %v245 = vpop.f32.mrb[0].mxu0
    %246 = vmatprep.mubr.f32.mxu0 0.0
    %247 = vmatmul.mubr.f32.gmra.mrb[0].mxu0 %v123
    %v248 = vpop.f32.mrb[0].mxu0
    %v249 = vadd.f32 %v96, %v248
    %v250 = vpop.f32.mrb[0].mxu0
    %251 = vmatprep.mubr.f32.mxu0 0.0
    %252 = vmatmul.mubr.f32.gmra.mrb[0].mxu0 %v126
    %v253 = vpop.f32.mrb[0].mxu0
    %v254 = vadd.f32 %v101, %v253
    %v255 = vpop.f32.mrb[0].mxu0
    %256 = vdwg.mxu0
    %v257 = vmul.f32 %v219, 0.01
    %v258 = vmul.f32 %v224, 0.01
    %v259 = vmul.f32 %v229, 0.01
    %v260 = vmul.f32 %v234, 0.01
    %v261 = vmul.f32 %v239, 0.01
    %v262 = vmul.f32 %v244, 0.01
    %v263 = vmul.f32 %v249, 0.01
    %v264 = vmul.f32 %v254, 0.01
    %v265 = vmax.f32 %v219, %v257
    %v266 = vmax.f32 %v224, %v258
    %v267 = vmax.f32 %v229, %v259
    %v268 = vmax.f32 %v234, %v260
    %v269 = vmax.f32 %v239, %v261
    %v270 = vmax.f32 %v244, %v262
    %v271 = vmax.f32 %v249, %v263
    %v272 = vmax.f32 %v254, %v264
    %274 = vset.pattern.permute.xlu0 0
    %275 = vperm.xlu0 %274, %v49
    %v276 = vpop.permute.xlu0 %275
    %279 = vset.pattern.permute.xlu0 0
    %280 = vperm.xlu0 %279, %v50
    %v281 = vpop.permute.xlu0 %280
    %284 = vset.pattern.permute.xlu0 0
    %285 = vperm.xlu0 %284, %v51
    %v286 = vpop.permute.xlu0 %285
    %289 = vset.pattern.permute.xlu0 0
    %290 = vperm.xlu0 %289, %v52
    %v291 = vpop.permute.xlu0 %290
    %vm293 = vcmask 523264
    %v295 = vsel %vm293, %v45, 0
    %v298 = vsel %vm293, %v46, 0
    %v301 = vsel %vm293, %v47, 0
    %v304 = vsel %vm293, %v48, 0
    %306 = vmatprep.subr.mxu0 0.0
    %307 = vmatpush1.msra.mxu0 %v265
    %308 = vmatprep.subr.mxu0 0.0
    %309 = vmatpush1.msra.mxu0 %v266
    %310 = vmatprep.subr.mxu0 0.0
    %311 = vmatpush1.msra.mxu0 %v267
    %312 = vmatprep.subr.mxu0 0.0
    %313 = vmatpush1.msra.mxu0 %v268
    %314 = vmatprep.subr.mxu0 0.0
    %315 = vmatpush1.msra.mxu0 %v269
    %316 = vmatprep.subr.mxu0 0.0
    %317 = vmatpush1.msra.mxu0 %v270
    %318 = vmatprep.subr.mxu0 0.0
    %319 = vmatpush1.msra.mxu0 %v271
    %320 = vmatprep.subr.mxu0 0.0
    %321 = vmatpush1.msra.mxu0 %v272
    %322 = vmatprep.subr.mxu0 0.0
    %323 = vmatpush1.msra.mxu0 0.0
    %324 = vmatprep.subr.mxu0 0.0
    %325 = vmatpush1.msra.mxu0 0.0
    %326 = vmatprep.subr.mxu0 0.0
    %327 = vmatpush1.msra.mxu0 0.0
    %328 = vmatprep.subr.mxu0 0.0
    %329 = vmatpush1.msra.mxu0 0.0
    %330 = vmatprep.subr.mxu0 0.0
    %331 = vmatpush1.msra.mxu0 0.0
    %332 = vmatprep.subr.mxu0 0.0
    %333 = vmatpush1.msra.mxu0 0.0
    %334 = vmatprep.subr.mxu0 0.0
    %335 = vmatpush1.msra.mxu0 0.0
    %336 = vmatprep.subr.mxu0 0.0
    %337 = vmatpush1.msra.mxu0 0.0
    %338 = vmatprep.subr.mxu0 0.0
    %339 = vmatpush1.msra.mxu0 0.0
    %340 = vmatprep.subr.mxu0 0.0
    %341 = vmatpush1.msra.mxu0 0.0
    %342 = vmatprep.subr.mxu0 0.0
    %343 = vmatpush1.msra.mxu0 0.0
    %344 = vmatprep.subr.mxu0 0.0
    %345 = vmatpush1.msra.mxu0 0.0
    %346 = vmatprep.subr.mxu0 0.0
    %347 = vmatpush1.msra.mxu0 0.0
    %348 = vmatprep.subr.mxu0 0.0
    %349 = vmatpush1.msra.mxu0 0.0
    %350 = vmatprep.subr.mxu0 0.0
    %351 = vmatpush1.msra.mxu0 0.0
    %352 = vmatprep.subr.mxu0 0.0
    %353 = vmatpush1.msra.mxu0 0.0
    %354 = vmatprep.subr.mxu0 0.0
    %355 = vmatpush1.msra.mxu0 0.0
    %356 = vmatprep.subr.mxu0 0.0
    %357 = vmatpush1.msra.mxu0 0.0
    %358 = vmatprep.subr.mxu0 0.0
    %359 = vmatpush1.msra.mxu0 0.0
    %360 = vmatprep.subr.mxu0 0.0
    %361 = vmatpush1.msra.mxu0 0.0
    %362 = vmatprep.subr.mxu0 0.0
    %363 = vmatpush1.msra.mxu0 0.0
    %364 = vmatprep.subr.mxu0 0.0
    %365 = vmatpush1.msra.mxu0 0.0
    %366 = vmatprep.subr.mxu0 0.0
    %367 = vmatpush1.msra.mxu0 0.0
    %368 = vmatprep.subr.mxu0 0.0
    %369 = vmatpush1.msra.mxu0 0.0
    %370 = vmatprep.mubr.f32.mxu0 0.0
    %371 = vmatmul.mubr.f32.gmra.mrb[0].mxu0 %v295
    %v372 = vpop.f32.mrb[0].mxu0
    %v373 = vadd.f32 %v276, %v372
    %v374 = vpop.f32.mrb[0].mxu0
    %375 = vmatprep.mubr.f32.mxu0 0.0
    %376 = vmatmul.mubr.f32.gmra.mrb[0].mxu0 %v298
    %v377 = vpop.f32.mrb[0].mxu0
    %v378 = vadd.f32 %v281, %v377
    %v379 = vpop.f32.mrb[0].mxu0
    %380 = vmatprep.mubr.f32.mxu0 0.0
    %381 = vmatmul.mubr.f32.gmra.mrb[0].mxu0 %v301
    %v382 = vpop.f32.mrb[0].mxu0
    %v383 = vadd.f32 %v286, %v382
    %v384 = vpop.f32.mrb[0].mxu0
    %385 = vmatprep.mubr.f32.mxu0 0.0
    %386 = vmatmul.mubr.f32.gmra.mrb[0].mxu0 %v304
    %v387 = vpop.f32.mrb[0].mxu0
    %v388 = vadd.f32 %v291, %v387
    %v389 = vpop.f32.mrb[0].mxu0
    %390 = vdwg.mxu0
    %v391 = vmul.f32 %v373, 0.01
    %v392 = vmul.f32 %v378, 0.01
    %v393 = vmul.f32 %v383, 0.01
    %v394 = vmul.f32 %v388, 0.01
    %v395 = vmax.f32 %v373, %v391
    %v396 = vmax.f32 %v378, %v392
    %v397 = vmax.f32 %v383, %v393
    %v398 = vmax.f32 %v388, %v394
    %400 = vset.pattern.permute.xlu0 0
    %401 = vperm.xlu0 %400, %v54
    %v402 = vpop.permute.xlu0 %401
    %v404 = vlaneseq
    %v405 = vshrl.u32 %v404, 7
    %v406 = vsub.s32 0, %v405
    %v407 = vrot.slane %v402, %v406
    %vm408 = vcmask 261120
    %v410 = vsel %vm408, %v53, 0
    %412 = vmatprep.subr.mxu0 0.0
    %413 = vmatpush1.msra.mxu0 %v395
    %414 = vmatprep.subr.mxu0 0.0
    %415 = vmatpush1.msra.mxu0 %v396
    %416 = vmatprep.subr.mxu0 0.0
    %417 = vmatpush1.msra.mxu0 %v397
    %418 = vmatprep.subr.mxu0 0.0
    %419 = vmatpush1.msra.mxu0 %v398
    %420 = vmatprep.subr.mxu0 0.0
    %421 = vmatpush1.msra.mxu0 0.0
    %422 = vmatprep.subr.mxu0 0.0
    %423 = vmatpush1.msra.mxu0 0.0
    %424 = vmatprep.subr.mxu0 0.0
    %425 = vmatpush1.msra.mxu0 0.0
    %426 = vmatprep.subr.mxu0 0.0
    %427 = vmatpush1.msra.mxu0 0.0
    %428 = vmatprep.subr.mxu0 0.0
    %429 = vmatpush1.msra.mxu0 0.0
    %430 = vmatprep.subr.mxu0 0.0
    %431 = vmatpush1.msra.mxu0 0.0
    %432 = vmatprep.subr.mxu0 0.0
    %433 = vmatpush1.msra.mxu0 0.0
    %434 = vmatprep.subr.mxu0 0.0
    %435 = vmatpush1.msra.mxu0 0.0
    %436 = vmatprep.subr.mxu0 0.0
    %437 = vmatpush1.msra.mxu0 0.0
    %438 = vmatprep.subr.mxu0 0.0
    %439 = vmatpush1.msra.mxu0 0.0
    %440 = vmatprep.subr.mxu0 0.0
    %441 = vmatpush1.msra.mxu0 0.0
    %442 = vmatprep.subr.mxu0 0.0
    %443 = vmatpush1.msra.mxu0 0.0
    %444 = vmatprep.subr.mxu0 0.0
    %445 = vmatpush1.msra.mxu0 0.0
    %446 = vmatprep.subr.mxu0 0.0
    %447 = vmatpush1.msra.mxu0 0.0
    %448 = vmatprep.subr.mxu0 0.0
    %449 = vmatpush1.msra.mxu0 0.0
    %450 = vmatprep.subr.mxu0 0.0
    %451 = vmatpush1.msra.mxu0 0.0
    %452 = vmatprep.subr.mxu0 0.0
    %453 = vmatpush1.msra.mxu0 0.0
    %454 = vmatprep.subr.mxu0 0.0
    %455 = vmatpush1.msra.mxu0 0.0
    %456 = vmatprep.subr.mxu0 0.0
    %457 = vmatpush1.msra.mxu0 0.0
    %458 = vmatprep.subr.mxu0 0.0
    %459 = vmatpush1.msra.mxu0 0.0
    %460 = vmatprep.subr.mxu0 0.0
    %461 = vmatpush1.msra.mxu0 0.0
    %462 = vmatprep.subr.mxu0 0.0
    %463 = vmatpush1.msra.mxu0 0.0
    %464 = vmatprep.subr.mxu0 0.0
    %465 = vmatpush1.msra.mxu0 0.0
    %466 = vmatprep.subr.mxu0 0.0
    %467 = vmatpush1.msra.mxu0 0.0
    %468 = vmatprep.subr.mxu0 0.0
    %469 = vmatpush1.msra.mxu0 0.0
    %470 = vmatprep.subr.mxu0 0.0
    %471 = vmatpush1.msra.mxu0 0.0
    %472 = vmatprep.subr.mxu0 0.0
    %473 = vmatpush1.msra.mxu0 0.0
    %474 = vmatprep.subr.mxu0 0.0
    %475 = vmatpush1.msra.mxu0 0.0
    %476 = vmatprep.mubr.f32.mxu0 0.0
    %477 = vmatmul.mubr.f32.gmra.mrb[0].mxu0 %v410
    %v478 = vpop.f32.mrb[0].mxu0
    %v479 = vadd.f32 %v407, %v478
    %v480 = vpop.f32.mrb[0].mxu0
    %481 = vdwg.mxu0
    %vm482 = vcmask 516096
    %483 = vst.msk [vmem:[#allocation3] sm:$0x1] %vm482, %v479
    // Predicated region
    $region30: #{tpu_custom_call.1} parent=1 // pred_check
      _
    $region31: #{tpu_custom_call.1} parent=1 // pred_check_branch
      %485 = sbr.rel (0) target = $region33
    $region32: #{tpu_custom_call.1} parent=1 // pred_region
      %s487 = ssub.s32 16, 16
      %488 = vsyncadd [#allocation4], %s487
      %s490 = sshll.u32 [#allocation3], 4
      %s491 = int_to_ptr.vmem [resolvable:$true] %s490
      %493 = dma.vmem_to_hbm [thread:$0]  %s491, 16, %s7, [#allocation4]
    $region33: #{tpu_custom_call.1} parent=1 // pred_fallthru
      _
    // Predicated region
    $region34: #{tpu_custom_call.1} parent=1 // pred_check
      _
    $region35: #{tpu_custom_call.1} parent=1 // pred_check_branch
      %495 = sbr.rel (0) target = $region37
    $region36: #{tpu_custom_call.1} parent=1 // pred_region
      %496 = dma.done [#allocation4], 16
    $region37: #{tpu_custom_call.1} parent=1 // pred_fallthru
      _
    %497 = vsyncpa [#allocation4], 1

</llo_original>
